<compile_context>
chip_gen: v5e
topology: v5e:2x2
jax: 0.10.0
libtpu: 0.0.40
codegen_flags: <defaults>
</compile_context>

<pallas_src>
import math

import jax
import jax.numpy as jnp
import numpy as np
from jax.experimental import pallas as pl
from jax.experimental.pallas import tpu as pltpu

_LANE = 128  # lane-padded width for node dim and all hidden dims


# ---------------------------------------------------------------------------
# Kernel
# ---------------------------------------------------------------------------
def vae_kernel(x_ref, eps_ref, w_ref, b_ref, xhat_ref, mulv_ref):
    f32 = jnp.float32

    def dense(h, i, relu):
        y = jnp.dot(h, w_ref[i], preferred_element_type=f32) + b_ref[pl.ds(i, 1), :]
        return jnp.maximum(y, 0.0) if relu else y

    x = x_ref[...]          # [TB, 128]

    # ---- encoder ----
    h1 = dense(x, 0, True)                       # fc1  (GDC1 + gw1/gb1 folded in)
    h2 = dense(h1, 1, True)                      # fc2
    h3 = dense(h2, 2, True)                      # fc3
    mulv = dense(h3, 3, False)                   # fused fc41|fc42: mu @ lanes 0..4,
                                                 #                  logvar @ lanes 64..68

    # ---- reparameterize ----
    # eps is pre-placed at lanes 64..68; keep z "split": mu part at 0..4,
    # eps*std part at 64..68 (fc5's weight has duplicated rows to consume both).
    lane = jax.lax.broadcasted_iota(jnp.int32, mulv.shape, 1)
    z_split = jnp.where(lane < 64, mulv, 0.0) + eps_ref[...] * jnp.exp(0.5 * mulv)

    # ---- decoder ----
    h5 = dense(z_split, 4, True)                 # fc5 (split-z aware weight)
    h6 = dense(h5, 5, True)                      # fc6
    h7 = dense(h6, 6, True)                      # fc7
    xhat = dense(h7, 7, False)                   # fc8 + GDC2 (gw2/gb2/M folded in)

    xhat_ref[...] = xhat
    mulv_ref[...] = mulv


# ---------------------------------------------------------------------------
# Parameter construction (deterministic, mirrors torch init shapes/ranges)
# ---------------------------------------------------------------------------
def make_params(key, node_num, in_features=1, out_features=1, k=2):
    keys = iter(jax.random.split(key, 64))

    def uniform(shape, bound):
        return jax.random.uniform(next(keys), shape, jnp.float32, -bound, bound)

    def linear(in_f, out_f):
        bound = 1.0 / math.sqrt(in_f)
        # stored as [in, out] (already transposed for y = x @ W); bias as [1, out]
        return uniform((in_f, out_f), bound), uniform((1, out_f), bound)

    stdv1 = 1.0 / math.sqrt(in_features * k)
    stdv2 = 1.0 / math.sqrt(out_features * k)
    p = {}
    p["gw1"], p["gb1"] = uniform((1, 1), stdv1), uniform((1, 1), stdv1)
    p["w1"], p["b1"] = linear(node_num, 60)
    p["w2"], p["b2"] = linear(60, 30)
    p["w3"], p["b3"] = linear(30, 10)
    p["w41"], p["b41"] = linear(10, 5)
    p["w42"], p["b42"] = linear(10, 5)
    p["w5"], p["b5"] = linear(5, 10)
    p["w6"], p["b6"] = linear(10, 30)
    p["w7"], p["b7"] = linear(30, 60)
    p["w8"], p["b8"] = linear(60, node_num)
    p["gw2"], p["gb2"] = uniform((1, 1), stdv2), uniform((1, 1), stdv2)
    return p


# ---------------------------------------------------------------------------
# Parameter packing / GDC folding (done once in the wrapper, pure XLA)
# ---------------------------------------------------------------------------
def _pack_params(p, m_pad, H=_LANE):
    def padW(w):
        out = jnp.zeros((H, H), jnp.float32)
        return out.at[: w.shape[0], : w.shape[1]].set(w)

    def padB(b):
        out = jnp.zeros((H,), jnp.float32)
        b = b.reshape(-1)
        return out.at[: b.shape[0]].set(b)

    gw1 = p["gw1"][0, 0]
    gb1 = p["gb1"][0, 0]
    gw2 = p["gw2"][0, 0]
    gb2 = p["gb2"][0, 0]

    w1p = padW(p["w1"])
    w8p = padW(p["w8"])

    # GDC1 fully folded into fc1:
    #   h1_pre = ((gw1*x) @ M + gb1) @ W1 + b1 = x @ (gw1 * M @ W1) + (b1 + gb1*colsum(W1))
    w1f = gw1 * jnp.dot(m_pad, w1p)
    b1f = padB(p["b1"]) + gb1 * jnp.sum(w1p, axis=0)

    # fc41 / fc42 fused into one matmul: mu -> lanes 0..4, logvar -> lanes 64..68
    w4c = jnp.zeros((H, H), jnp.float32)
    w4c = w4c.at[:10, 0:5].set(p["w41"]).at[:10, 64:69].set(p["w42"])
    b4c = jnp.zeros((H,), jnp.float32)
    b4c = b4c.at[0:5].set(p["b41"].reshape(-1)).at[64:69].set(p["b42"].reshape(-1))

    # fc5 with rows duplicated at 64..68 so it consumes both halves of the split z:
    #   z_split @ w5a = mu @ W5 + (eps*std) @ W5 = z @ W5
    w5a = jnp.zeros((H, H), jnp.float32)
    w5a = w5a.at[0:5, 0:10].set(p["w5"]).at[64:69, 0:10].set(p["w5"])

    # GDC2 fully folded into fc8:
    #   xhat = gw2 * (h7 @ W8 + b8) @ M + gb2 = h7 @ (gw2 * W8 @ M) + (gw2 * b8 @ M + gb2)
    w8f = gw2 * jnp.dot(w8p, m_pad)
    b8f = gw2 * jnp.dot(padB(p["b8"]), m_pad) + gb2

    weights = jnp.stack([
        w1f,                          # 0: fc1   (GDC1 folded)
        padW(p["w2"]),                # 1: fc2
        padW(p["w3"]),                # 2: fc3
        w4c,                          # 3: fc41 | fc42 fused
        w5a,                          # 4: fc5   (split-z aware)
        padW(p["w6"]),                # 5: fc6
        padW(p["w7"]),                # 6: fc7
        w8f,                          # 7: fc8   (GDC2 folded)
    ])

    biases = jnp.stack([
        b1f,
        padB(p["b2"]),
        padB(p["b3"]),
        b4c,
        padB(p["b5"]),
        padB(p["b6"]),
        padB(p["b7"]),
        b8f,
    ])
    return weights, biases


# ---------------------------------------------------------------------------
# Wrapper
# ---------------------------------------------------------------------------
def vae_forward(x, adj, eps, params):
    B, N = x.shape
    H = _LANE
    assert N <= H, "single-tile kernel: nodeNum must be <= 128"

    # batch padding / tiling (sublane multiple; 128-row tiles for large batches)
    if B <= H:
        B_pad = max(8, -(-B // 8) * 8)
        TB = B_pad
    else:
        B_pad = -(-B // 128) * 128
        TB = 128
    grid = (B_pad // TB,)

    # Precompute M = (I + A + A^2)^T once, padded to [128, 128], then fold it
    # (with the GDC scalars) into fc1 / fc8 so the kernel never sees it.
    at_ = adj.T.astype(jnp.float32)
    m = jnp.eye(N, dtype=jnp.float32) + at_ + jnp.dot(at_, at_)
    m_pad = jnp.zeros((H, H), jnp.float32).at[:N, :N].set(m)

    x_pad = jnp.zeros((B_pad, H), jnp.float32).at[:B, :N].set(x)
    # eps aligned with the logvar lanes (64..68)
    eps_pad = jnp.zeros((B_pad, H), jnp.float32).at[:B, 64:69].set(eps)

    weights, biases = _pack_params(params, m_pad, H)

    # 8 dense matmuls per row tile, all [*,128]@[128,128]
    flops = B_pad * 8 * 2 * H * H
    bytes_accessed = 4 * (x_pad.size + eps_pad.size
                          + weights.size + biases.size + 2 * B_pad * H)

    fn = pl.pallas_call(
        vae_kernel,
        out_shape=(jax.ShapeDtypeStruct((B_pad, H), jnp.float32),   # x_hat (padded)
                   jax.ShapeDtypeStruct((B_pad, H), jnp.float32)),  # mu|logvar packed
        grid_spec=pltpu.PrefetchScalarGridSpec(
            num_scalar_prefetch=0,
            grid=grid,
            in_specs=[
                pl.BlockSpec((TB, H), lambda i: (i, 0)),        # x
                pl.BlockSpec((TB, H), lambda i: (i, 0)),        # eps
                pl.BlockSpec((8, H, H), lambda i: (0, 0, 0)),   # packed weights
                pl.BlockSpec((8, H), lambda i: (0, 0)),         # packed biases
            ],
            out_specs=[
                pl.BlockSpec((TB, H), lambda i: (i, 0)),
                pl.BlockSpec((TB, H), lambda i: (i, 0)),
            ],
        ),
        compiler_params=pltpu.CompilerParams(
            dimension_semantics=("parallel",)),
        cost_estimate=pl.CostEstimate(
            flops=flops,
            transcendentals=B_pad * H,
            bytes_accessed=bytes_accessed),
    )
    xhat_pad, mulv = fn(x_pad, eps_pad, weights, biases)
    return xhat_pad[:B, :N], mulv[:B, 0:5], mulv[:B, 64:69]


# ---------------------------------------------------------------------------
# Pure-JAX reference (mirrors the PyTorch module, unpadded params)
# ---------------------------------------------------------------------------
def vae_reference(x, adj, eps, p):
    adj2 = adj @ adj

    def gdc(s, w, b):
        sup = s * w[0, 0]
        return sup + sup @ adj.T + sup @ adj2.T + b[0, 0]

    def dense(h, w, b, relu):
        y = h @ w + b
        return jnp.maximum(y, 0.0) if relu else y

    g1 = gdc(x, p["gw1"], p["gb1"])
    h1 = dense(g1, p["w1"], p["b1"], True)
    h2 = dense(h1, p["w2"], p["b2"], True)
    h3 = dense(h2, p["w3"], p["b3"], True)
    mu = dense(h3, p["w41"], p["b41"], False)
    logvar = dense(h3, p["w42"], p["b42"], False)
    z = mu + eps * jnp.exp(0.5 * logvar)
    h5 = dense(z, p["w5"], p["b5"], True)
    h6 = dense(h5, p["w6"], p["b6"], True)
    h7 = dense(h6, p["w7"], p["b7"], True)
    d = dense(h7, p["w8"], p["b8"], False)
    xhat = gdc(d, p["gw2"], p["gb2"])
    return xhat, mu, logvar


# ---------------------------------------------------------------------------
if __name__ == "__main__":
    B = 2            # batch
    N = 64           # nodeNum
    key = jax.random.PRNGKey(0)
    k_x, k_adj, k_eps, k_par = jax.random.split(key, 4)

    x = jax.random.normal(k_x, (B, N), dtype=jnp.float32)
    # row-normalized random dense "diffusion" adjacency
    adj_raw = jax.random.uniform(k_adj, (N, N), dtype=jnp.float32)
    adj = adj_raw / jnp.sum(adj_raw, axis=1, keepdims=True)
    eps = jax.random.normal(k_eps, (B, 5), dtype=jnp.float32)

    params = make_params(k_par, N, in_features=1, out_features=1, k=2)

    x_hat, mu, logvar = vae_forward(x, adj, eps, params)
    jax.block_until_ready((x_hat, mu, logvar))

    # sanity check against pure-JAX reference
    r_xhat, r_mu, r_logvar = vae_reference(x, adj, eps, params)
    np.testing.assert_allclose(np.asarray(x_hat), np.asarray(r_xhat), rtol=2e-2, atol=2e-3)
    np.testing.assert_allclose(np.asarray(mu), np.asarray(r_mu), rtol=2e-2, atol=2e-3)
    np.testing.assert_allclose(np.asarray(logvar), np.asarray(r_logvar), rtol=2e-2, atol=2e-3)

    print("KERNEL_OK")
</pallas_src>

<mosaic_0001>
module attributes {stable_mosaic.version = 11 : i64} {
  func.func @vae_kernel(%arg0: i32, %arg1: memref<8x128xf32, #tpu.memory_space<vmem>>, %arg2: memref<8x128xf32, #tpu.memory_space<vmem>>, %arg3: memref<8x128x128xf32, #tpu.memory_space<vmem>>, %arg4: memref<8x128xf32, #tpu.memory_space<vmem>>, %arg5: memref<8x128xf32, #tpu.memory_space<vmem>>, %arg6: memref<8x128xf32, #tpu.memory_space<vmem>>) attributes {dimension_semantics = [#tpu.dimension_semantics<parallel>], iteration_bounds = array<i64: 1>, scalar_prefetch = 0 : i64, scratch_operands = 0 : i64, tpu.core_type = #tpu.core_type<tc>, window_params = [{transform_indices = @transform_0, window_bounds = array<i64: 8, 128>}, {transform_indices = @transform_1, window_bounds = array<i64: 8, 128>}, {pipeline_mode = #tpu.pipeline_mode<synchronous>, transform_indices = @transform_2, window_bounds = array<i64: 8, 128, 128>}, {pipeline_mode = #tpu.pipeline_mode<synchronous>, transform_indices = @transform_3, window_bounds = array<i64: 8, 128>}, {transform_indices = @transform_4, window_bounds = array<i64: 8, 128>}, {transform_indices = @transform_5, window_bounds = array<i64: 8, 128>}]} {
    %c0 = arith.constant 0 : index
    %c0_0 = arith.constant 0 : index
    %0 = vector.load %arg1[%c0, %c0_0] : memref<8x128xf32, #tpu.memory_space<vmem>>, vector<8x128xf32>
    %c0_1 = arith.constant 0 : index
    %c0_2 = arith.constant 0 : index
    %c0_3 = arith.constant 0 : index
    %1 = vector.load %arg3[%c0_1, %c0_2, %c0_3] : memref<8x128x128xf32, #tpu.memory_space<vmem>>, vector<1x128x128xf32>
    %2 = vector.shape_cast %1 : vector<1x128x128xf32> to vector<128x128xf32>
    %cst = arith.constant dense<0.000000e+00> : vector<8x128xf32>
    %3 = tpu.matmul %0, %2, %cst {dimension_numbers = #tpu.dot_dimension_numbers<[1], [0], [0], [1], [0, 0, 1, 1], [], []>} : vector<8x128xf32>, vector<128x128xf32>, vector<8x128xf32> -> vector<8x128xf32>
    %c0_4 = arith.constant 0 : index
    %c0_5 = arith.constant 0 : index
    %4 = vector.load %arg4[%c0_4, %c0_5] : memref<8x128xf32, #tpu.memory_space<vmem>>, vector<1x128xf32>
    %5 = vector.broadcast %4 : vector<1x128xf32> to vector<8x128xf32>
    %6 = arith.addf %3, %5 : vector<8x128xf32>
    %cst_6 = arith.constant 0.000000e+00 : f32
    %7 = vector.broadcast %cst_6 : f32 to vector<8x128xf32>
    %8 = arith.maximumf %6, %7 : vector<8x128xf32>
    %c1 = arith.constant 1 : index
    %c0_7 = arith.constant 0 : index
    %c0_8 = arith.constant 0 : index
    %9 = vector.load %arg3[%c1, %c0_7, %c0_8] : memref<8x128x128xf32, #tpu.memory_space<vmem>>, vector<1x128x128xf32>
    %10 = vector.shape_cast %9 : vector<1x128x128xf32> to vector<128x128xf32>
    %cst_9 = arith.constant dense<0.000000e+00> : vector<8x128xf32>
    %11 = tpu.matmul %8, %10, %cst_9 {dimension_numbers = #tpu.dot_dimension_numbers<[1], [0], [0], [1], [0, 0, 1, 1], [], []>} : vector<8x128xf32>, vector<128x128xf32>, vector<8x128xf32> -> vector<8x128xf32>
    %c1_10 = arith.constant 1 : index
    %c0_11 = arith.constant 0 : index
    %12 = vector.load %arg4[%c1_10, %c0_11] : memref<8x128xf32, #tpu.memory_space<vmem>>, vector<1x128xf32>
    %13 = vector.broadcast %12 : vector<1x128xf32> to vector<8x128xf32>
    %14 = arith.addf %11, %13 : vector<8x128xf32>
    %cst_12 = arith.constant 0.000000e+00 : f32
    %15 = vector.broadcast %cst_12 : f32 to vector<8x128xf32>
    %16 = arith.maximumf %14, %15 : vector<8x128xf32>
    %c2 = arith.constant 2 : index
    %c0_13 = arith.constant 0 : index
    %c0_14 = arith.constant 0 : index
    %17 = vector.load %arg3[%c2, %c0_13, %c0_14] : memref<8x128x128xf32, #tpu.memory_space<vmem>>, vector<1x128x128xf32>
    %18 = vector.shape_cast %17 : vector<1x128x128xf32> to vector<128x128xf32>
    %cst_15 = arith.constant dense<0.000000e+00> : vector<8x128xf32>
    %19 = tpu.matmul %16, %18, %cst_15 {dimension_numbers = #tpu.dot_dimension_numbers<[1], [0], [0], [1], [0, 0, 1, 1], [], []>} : vector<8x128xf32>, vector<128x128xf32>, vector<8x128xf32> -> vector<8x128xf32>
    %c2_16 = arith.constant 2 : index
    %c0_17 = arith.constant 0 : index
    %20 = vector.load %arg4[%c2_16, %c0_17] : memref<8x128xf32, #tpu.memory_space<vmem>>, vector<1x128xf32>
    %21 = vector.broadcast %20 : vector<1x128xf32> to vector<8x128xf32>
    %22 = arith.addf %19, %21 : vector<8x128xf32>
    %cst_18 = arith.constant 0.000000e+00 : f32
    %23 = vector.broadcast %cst_18 : f32 to vector<8x128xf32>
    %24 = arith.maximumf %22, %23 : vector<8x128xf32>
    %c3 = arith.constant 3 : index
    %c0_19 = arith.constant 0 : index
    %c0_20 = arith.constant 0 : index
    %25 = vector.load %arg3[%c3, %c0_19, %c0_20] : memref<8x128x128xf32, #tpu.memory_space<vmem>>, vector<1x128x128xf32>
    %26 = vector.shape_cast %25 : vector<1x128x128xf32> to vector<128x128xf32>
    %cst_21 = arith.constant dense<0.000000e+00> : vector<8x128xf32>
    %27 = tpu.matmul %24, %26, %cst_21 {dimension_numbers = #tpu.dot_dimension_numbers<[1], [0], [0], [1], [0, 0, 1, 1], [], []>} : vector<8x128xf32>, vector<128x128xf32>, vector<8x128xf32> -> vector<8x128xf32>
    %c3_22 = arith.constant 3 : index
    %c0_23 = arith.constant 0 : index
    %28 = vector.load %arg4[%c3_22, %c0_23] : memref<8x128xf32, #tpu.memory_space<vmem>>, vector<1x128xf32>
    %29 = vector.broadcast %28 : vector<1x128xf32> to vector<8x128xf32>
    %30 = arith.addf %27, %29 : vector<8x128xf32>
    %31 = tpu.iota {dimensions = array<i32: 1>} : vector<8x128xi32>
    %c64_i32 = arith.constant 64 : i32
    %32 = vector.broadcast %c64_i32 : i32 to vector<8x128xi32>
    %33 = arith.cmpi slt, %31, %32 : vector<8x128xi32>
    %cst_24 = arith.constant 0.000000e+00 : f32
    %34 = vector.broadcast %cst_24 : f32 to vector<8x128xf32>
    %35 = arith.select %33, %30, %34 : vector<8x128xi1>, vector<8x128xf32>
    %c0_25 = arith.constant 0 : index
    %c0_26 = arith.constant 0 : index
    %36 = vector.load %arg2[%c0_25, %c0_26] : memref<8x128xf32, #tpu.memory_space<vmem>>, vector<8x128xf32>
    %cst_27 = arith.constant 5.000000e-01 : f32
    %37 = vector.broadcast %cst_27 : f32 to vector<8x128xf32>
    %38 = arith.mulf %37, %30 : vector<8x128xf32>
    %39 = math.exp %38 : vector<8x128xf32>
    %40 = arith.mulf %36, %39 : vector<8x128xf32>
    %41 = arith.addf %35, %40 : vector<8x128xf32>
    %c4 = arith.constant 4 : index
    %c0_28 = arith.constant 0 : index
    %c0_29 = arith.constant 0 : index
    %42 = vector.load %arg3[%c4, %c0_28, %c0_29] : memref<8x128x128xf32, #tpu.memory_space<vmem>>, vector<1x128x128xf32>
    %43 = vector.shape_cast %42 : vector<1x128x128xf32> to vector<128x128xf32>
    %cst_30 = arith.constant dense<0.000000e+00> : vector<8x128xf32>
    %44 = tpu.matmul %41, %43, %cst_30 {dimension_numbers = #tpu.dot_dimension_numbers<[1], [0], [0], [1], [0, 0, 1, 1], [], []>} : vector<8x128xf32>, vector<128x128xf32>, vector<8x128xf32> -> vector<8x128xf32>
    %c4_31 = arith.constant 4 : index
    %c0_32 = arith.constant 0 : index
    %45 = vector.load %arg4[%c4_31, %c0_32] : memref<8x128xf32, #tpu.memory_space<vmem>>, vector<1x128xf32>
    %46 = vector.broadcast %45 : vector<1x128xf32> to vector<8x128xf32>
    %47 = arith.addf %44, %46 : vector<8x128xf32>
    %cst_33 = arith.constant 0.000000e+00 : f32
    %48 = vector.broadcast %cst_33 : f32 to vector<8x128xf32>
    %49 = arith.maximumf %47, %48 : vector<8x128xf32>
    %c5 = arith.constant 5 : index
    %c0_34 = arith.constant 0 : index
    %c0_35 = arith.constant 0 : index
    %50 = vector.load %arg3[%c5, %c0_34, %c0_35] : memref<8x128x128xf32, #tpu.memory_space<vmem>>, vector<1x128x128xf32>
    %51 = vector.shape_cast %50 : vector<1x128x128xf32> to vector<128x128xf32>
    %cst_36 = arith.constant dense<0.000000e+00> : vector<8x128xf32>
    %52 = tpu.matmul %49, %51, %cst_36 {dimension_numbers = #tpu.dot_dimension_numbers<[1], [0], [0], [1], [0, 0, 1, 1], [], []>} : vector<8x128xf32>, vector<128x128xf32>, vector<8x128xf32> -> vector<8x128xf32>
    %c5_37 = arith.constant 5 : index
    %c0_38 = arith.constant 0 : index
    %53 = vector.load %arg4[%c5_37, %c0_38] : memref<8x128xf32, #tpu.memory_space<vmem>>, vector<1x128xf32>
    %54 = vector.broadcast %53 : vector<1x128xf32> to vector<8x128xf32>
    %55 = arith.addf %52, %54 : vector<8x128xf32>
    %cst_39 = arith.constant 0.000000e+00 : f32
    %56 = vector.broadcast %cst_39 : f32 to vector<8x128xf32>
    %57 = arith.maximumf %55, %56 : vector<8x128xf32>
    %c6 = arith.constant 6 : index
    %c0_40 = arith.constant 0 : index
    %c0_41 = arith.constant 0 : index
    %58 = vector.load %arg3[%c6, %c0_40, %c0_41] : memref<8x128x128xf32, #tpu.memory_space<vmem>>, vector<1x128x128xf32>
    %59 = vector.shape_cast %58 : vector<1x128x128xf32> to vector<128x128xf32>
    %cst_42 = arith.constant dense<0.000000e+00> : vector<8x128xf32>
    %60 = tpu.matmul %57, %59, %cst_42 {dimension_numbers = #tpu.dot_dimension_numbers<[1], [0], [0], [1], [0, 0, 1, 1], [], []>} : vector<8x128xf32>, vector<128x128xf32>, vector<8x128xf32> -> vector<8x128xf32>
    %c6_43 = arith.constant 6 : index
    %c0_44 = arith.constant 0 : index
    %61 = vector.load %arg4[%c6_43, %c0_44] : memref<8x128xf32, #tpu.memory_space<vmem>>, vector<1x128xf32>
    %62 = vector.broadcast %61 : vector<1x128xf32> to vector<8x128xf32>
    %63 = arith.addf %60, %62 : vector<8x128xf32>
    %cst_45 = arith.constant 0.000000e+00 : f32
    %64 = vector.broadcast %cst_45 : f32 to vector<8x128xf32>
    %65 = arith.maximumf %63, %64 : vector<8x128xf32>
    %c7 = arith.constant 7 : index
    %c0_46 = arith.constant 0 : index
    %c0_47 = arith.constant 0 : index
    %66 = vector.load %arg3[%c7, %c0_46, %c0_47] : memref<8x128x128xf32, #tpu.memory_space<vmem>>, vector<1x128x128xf32>
    %67 = vector.shape_cast %66 : vector<1x128x128xf32> to vector<128x128xf32>
    %cst_48 = arith.constant dense<0.000000e+00> : vector<8x128xf32>
    %68 = tpu.matmul %65, %67, %cst_48 {dimension_numbers = #tpu.dot_dimension_numbers<[1], [0], [0], [1], [0, 0, 1, 1], [], []>} : vector<8x128xf32>, vector<128x128xf32>, vector<8x128xf32> -> vector<8x128xf32>
    %c7_49 = arith.constant 7 : index
    %c0_50 = arith.constant 0 : index
    %69 = vector.load %arg4[%c7_49, %c0_50] : memref<8x128xf32, #tpu.memory_space<vmem>>, vector<1x128xf32>
    %70 = vector.broadcast %69 : vector<1x128xf32> to vector<8x128xf32>
    %71 = arith.addf %68, %70 : vector<8x128xf32>
    %c0_51 = arith.constant 0 : index
    %c0_52 = arith.constant 0 : index
    %72 = vector.load %arg5[%c0_51, %c0_52] : memref<8x128xf32, #tpu.memory_space<vmem>>, vector<8x128xf32>
    tpu.vector_store %arg5[%c0_51, %c0_52], %71 {strides = array<i32>} : memref<8x128xf32, #tpu.memory_space<vmem>>, vector<8x128xf32>,
    %c0_53 = arith.constant 0 : index
    %c0_54 = arith.constant 0 : index
    %73 = vector.load %arg6[%c0_53, %c0_54] : memref<8x128xf32, #tpu.memory_space<vmem>>, vector<8x128xf32>
    tpu.vector_store %arg6[%c0_53, %c0_54], %30 {strides = array<i32>} : memref<8x128xf32, #tpu.memory_space<vmem>>, vector<8x128xf32>,
    return
  }
  func.func @transform_0(%arg0: i32) -> (i32, i32) {
    %c0_i32 = arith.constant 0 : i32
    %c0_i32_0 = arith.constant 0 : i32
    return %arg0, %c0_i32 : i32, i32
  }
  func.func @transform_1(%arg0: i32) -> (i32, i32) {
    %c0_i32 = arith.constant 0 : i32
    %c0_i32_0 = arith.constant 0 : i32
    return %arg0, %c0_i32 : i32, i32
  }
  func.func @transform_2(%arg0: i32) -> (i32, i32, i32) {
    %c0_i32 = arith.constant 0 : i32
    %c0_i32_0 = arith.constant 0 : i32
    %c0_i32_1 = arith.constant 0 : i32
    %c0_i32_2 = arith.constant 0 : i32
    return %c0_i32, %c0_i32_0, %c0_i32_1 : i32, i32, i32
  }
  func.func @transform_3(%arg0: i32) -> (i32, i32) {
    %c0_i32 = arith.constant 0 : i32
    %c0_i32_0 = arith.constant 0 : i32
    %c0_i32_1 = arith.constant 0 : i32
    return %c0_i32, %c0_i32_0 : i32, i32
  }
  func.func @transform_4(%arg0: i32) -> (i32, i32) {
    %c0_i32 = arith.constant 0 : i32
    %c0_i32_0 = arith.constant 0 : i32
    return %arg0, %c0_i32 : i32, i32
  }
  func.func @transform_5(%arg0: i32) -> (i32, i32) {
    %c0_i32 = arith.constant 0 : i32
    %c0_i32_0 = arith.constant 0 : i32
    return %arg0, %c0_i32 : i32, i32
  }
}

</mosaic_0001>

<llo_original>
// kernel: tpu_custom_call.1
$region0: #{tpu_custom_call.1}
  #allocation0 [shape = 'u32[]', space=smem, size = 0x4, offset = 0x4, fixed_abs, tag = 'smem constant byte address 0x4 - core index']
  #allocation1 [shape = 'u32[72,128]{1,0:T(1,128)}', space=vmem, size = 0x9000, scoped, tag = 'internal scratch']
  %s0 = inlined_call_operand.hbm [shape: f32[8,128], index: 0, kind: input, shape index: {}]
  %s1 = inlined_call_operand.hbm [shape: f32[8,128], index: 1, kind: input, shape index: {}]
  %s2 = inlined_call_operand.hbm [shape: f32[8,128,128], index: 2, kind: input, shape index: {}]
  %s3 = inlined_call_operand.hbm [shape: f32[8,128], index: 3, kind: input, shape index: {}]
  %s4 = inlined_call_operand.hbm [shape: f32[8,128], index: 4, kind: output, shape index: {0}]
  %s5 = inlined_call_operand.hbm [shape: f32[8,128], index: 5, kind: output, shape index: {1}]
  %6 = xla_tuple %s4, %s5
  %s7 = sld [smem:[#allocation0]]
  $region50: #{tpu_custom_call.1} parent=0
    _
  %s9 = ssub.s32 1, %s7
  %s10 = scalar_select 0, %s9, %s7
  $region1: #{tpu_custom_call.1} parent=0
    #allocation2 [shape = 'u8[4096]{0}', space=vmem, size = 0x1000, scoped, tag = 'input window, operand 0, single buffered']
    #allocation3 [shape = 's32[1]{0}', space=sflag, size = 0x4, scoped, tag = 'scoped memory for tpu_custom_call.1']
    #allocation4 [shape = 's32[1]{0}', space=sflag, size = 0x4, scoped, tag = 'scoped memory for tpu_custom_call.1']
    #allocation5 [shape = 'u8[4096]{0}', space=vmem, size = 0x1000, scoped, tag = 'input window, operand 1, single buffered']
    #allocation6 [shape = 's32[1]{0}', space=sflag, size = 0x4, scoped, tag = 'scoped memory for tpu_custom_call.1']
    #allocation7 [shape = 'u8[524288]{0}', space=vmem, size = 0x80000, scoped, tag = 'input window, operand 2, single buffered']
    #allocation8 [shape = 'u8[4096]{0}', space=vmem, size = 0x1000, scoped, tag = 'input window, operand 3, single buffered']
    #allocation9 [shape = 's32[1]{0}', space=sflag, size = 0x4, scoped, tag = 'scoped memory for tpu_custom_call.1']
    #allocation10 [shape = 'u8[4096]{0}', space=vmem, size = 0x1000, scoped, tag = 'output window, operand 0, single buffered']
    #allocation11 [shape = 'u8[4096]{0}', space=vmem, size = 0x1000, scoped, tag = 'output window, operand 1, single buffered']
    #allocation12 [shape = 's32[1]{0}', space=sflag, size = 0x4, scoped, tag = 'scoped memory for tpu_custom_call.1']
    %11 = vsyncpa [#allocation3], 0
    %12 = vsyncpa [#allocation6], 0
    %13 = vsyncpa [#allocation9], 0
    %14 = vsyncpa [#allocation4], 0
    %15 = vsyncpa [#allocation12], 0
    // Predicated region
    $region2: #{tpu_custom_call.1} parent=1 // pred_check
      _
    $region3: #{tpu_custom_call.1} parent=1 // pred_check_branch
      %17 = sbr.rel (0) target = $region5
    $region4: #{tpu_custom_call.1} parent=1 // pred_region
      %19 = vsyncadd [#allocation3], 0
      %s21 = sshll.u32 %s0, 4
      %s22 = int_to_ptr.hbm [resolvable:$true] %s21
      %s23 = sshll.u32 [#allocation2], 4
      %s24 = int_to_ptr.vmem [resolvable:$true] %s23
      %26 = dma.hbm_to_vmem [thread:$0]  %s22, 128, %s24, [#allocation3]
    $region5: #{tpu_custom_call.1} parent=1 // pred_fallthru
      _
    // Predicated region
    $region6: #{tpu_custom_call.1} parent=1 // pred_check
      _
    $region7: #{tpu_custom_call.1} parent=1 // pred_check_branch
      %28 = sbr.rel (0) target = $region9
    $region8: #{tpu_custom_call.1} parent=1 // pred_region
      %30 = vsyncadd [#allocation6], 0
      %s32 = sshll.u32 %s1, 4
      %s33 = int_to_ptr.hbm [resolvable:$true] %s32
      %s34 = sshll.u32 [#allocation5], 4
      %s35 = int_to_ptr.vmem [resolvable:$true] %s34
      %37 = dma.hbm_to_vmem [thread:$0]  %s33, 128, %s35, [#allocation6]
    $region9: #{tpu_custom_call.1} parent=1 // pred_fallthru
      _
    // Predicated region
    $region10: #{tpu_custom_call.1} parent=1 // pred_check
      _
    $region11: #{tpu_custom_call.1} parent=1 // pred_check_branch
      %39 = sbr.rel (0) target = $region13
    $region12: #{tpu_custom_call.1} parent=1 // pred_region
      %41 = vsyncadd [#allocation6], 0
      %s42 = sshll.u32 %s2, 4
      %s43 = int_to_ptr.hbm [resolvable:$true] %s42
      %s44 = sshll.u32 [#allocation7], 4
      %s45 = int_to_ptr.vmem [resolvable:$true] %s44
      %50 = dma.hbm_to_vmem [thread:$0]  %s43, 16384, %s45, [#allocation6], 128, 128, 8
    $region13: #{tpu_custom_call.1} parent=1 // pred_fallthru
      _
    // Predicated region
    $region14: #{tpu_custom_call.1} parent=1 // pred_check
      _
    $region15: #{tpu_custom_call.1} parent=1 // pred_check_branch
      %52 = sbr.rel (0) target = $region17
    $region16: #{tpu_custom_call.1} parent=1 // pred_region
      %54 = vsyncadd [#allocation9], 0
      %s56 = sshll.u32 %s3, 4
      %s57 = int_to_ptr.hbm [resolvable:$true] %s56
      %s58 = sshll.u32 [#allocation8], 4
      %s59 = int_to_ptr.vmem [resolvable:$true] %s58
      %61 = dma.hbm_to_vmem [thread:$0]  %s57, 128, %s59, [#allocation9]
    $region17: #{tpu_custom_call.1} parent=1 // pred_fallthru
      _
    // Predicated region
    $region18: #{tpu_custom_call.1} parent=1 // pred_check
      _
    $region19: #{tpu_custom_call.1} parent=1 // pred_check_branch
      %63 = sbr.rel (0) target = $region21
    $region20: #{tpu_custom_call.1} parent=1 // pred_region
      %65 = dma.done [#allocation3], 128
    $region21: #{tpu_custom_call.1} parent=1 // pred_fallthru
      _
    // Predicated region
    $region22: #{tpu_custom_call.1} parent=1 // pred_check
      _
    $region23: #{tpu_custom_call.1} parent=1 // pred_check_branch
      %67 = sbr.rel (0) target = $region25
    $region24: #{tpu_custom_call.1} parent=1 // pred_region
      %69 = dma.done [#allocation6], 128
    $region25: #{tpu_custom_call.1} parent=1 // pred_fallthru
      _
    // Predicated region
    $region26: #{tpu_custom_call.1} parent=1 // pred_check
      _
    $region27: #{tpu_custom_call.1} parent=1 // pred_check_branch
      %71 = sbr.rel (0) target = $region29
    $region28: #{tpu_custom_call.1} parent=1 // pred_region
      %73 = dma.done [#allocation6], 16384
    $region29: #{tpu_custom_call.1} parent=1 // pred_fallthru
      _
    // Predicated region
    $region30: #{tpu_custom_call.1} parent=1 // pred_check
      _
    $region31: #{tpu_custom_call.1} parent=1 // pred_check_branch
      %75 = sbr.rel (0) target = $region33
    $region32: #{tpu_custom_call.1} parent=1 // pred_region
      %77 = dma.done [#allocation9], 128
    $region33: #{tpu_custom_call.1} parent=1 // pred_fallthru
      _
    %v78 = vld [vmem:[#allocation2] sm:$0xff]
    %v79 = vld [vmem:[#allocation7] sm:$0xff]
    %v80 = vld [vmem:[#allocation7 + $0x8] sm:$0xff]
    %v81 = vld [vmem:[#allocation7 + $0x10] sm:$0xff]
    %v82 = vld [vmem:[#allocation7 + $0x18] sm:$0xff]
    %v83 = vld [vmem:[#allocation7 + $0x20] sm:$0xff]
    %v84 = vld [vmem:[#allocation7 + $0x28] sm:$0xff]
    %v85 = vld [vmem:[#allocation7 + $0x30] sm:$0xff]
    %v86 = vld [vmem:[#allocation7 + $0x38] sm:$0xff]
    %v87 = vld [vmem:[#allocation7 + $0x40] sm:$0xff]
    %v88 = vld [vmem:[#allocation7 + $0x48] sm:$0xff]
    %v89 = vld [vmem:[#allocation7 + $0x50] sm:$0xff]
    %v90 = vld [vmem:[#allocation7 + $0x58] sm:$0xff]
    %v91 = vld [vmem:[#allocation7 + $0x60] sm:$0xff]
    %v92 = vld [vmem:[#allocation7 + $0x68] sm:$0xff]
    %v93 = vld [vmem:[#allocation7 + $0x70] sm:$0xff]
    %v94 = vld [vmem:[#allocation7 + $0x78] sm:$0xff]
    %v95 = vld [vmem:[#allocation8] sm:$0x1]
    %v96 = vperm.slane %v95, 0
    %97 = vmatpush.msra.mxu0 %v94
    %98 = vmatpush.msra.mxu0 %v93
    %99 = vmatpush.msra.mxu0 %v92
    %100 = vmatpush.msra.mxu0 %v91
    %101 = vmatpush.msra.mxu0 %v90
    %102 = vmatpush.msra.mxu0 %v89
    %103 = vmatpush.msra.mxu0 %v88
    %104 = vmatpush.msra.mxu0 %v87
    %105 = vmatpush.msra.mxu0 %v86
    %106 = vmatpush.msra.mxu0 %v85
    %107 = vmatpush.msra.mxu0 %v84
    %108 = vmatpush.msra.mxu0 %v83
    %109 = vmatpush.msra.mxu0 %v82
    %110 = vmatpush.msra.mxu0 %v81
    %111 = vmatpush.msra.mxu0 %v80
    %112 = vmatpush.msra.mxu0 %v79
    %113 = vmatmul.f32.gmra.mxu0 %v78
    %v114 = vpop.f32.mrf.mxu0
    %v115 = vadd.f32 %v96, %v114
    %116 = vdwg.mxu0
    %v117 = vmax.f32 %v115, 0.0
    %s118 = scalar_lea.vmem [#allocation7], 128
    %v119 = vld [vmem:[%s118] sm:$0xff]
    %v120 = vld [vmem:[%s118 + $0x8] sm:$0xff]
    %v121 = vld [vmem:[%s118 + $0x10] sm:$0xff]
    %v122 = vld [vmem:[%s118 + $0x18] sm:$0xff]
    %v123 = vld [vmem:[%s118 + $0x20] sm:$0xff]
    %v124 = vld [vmem:[%s118 + $0x28] sm:$0xff]
    %v125 = vld [vmem:[%s118 + $0x30] sm:$0xff]
    %v126 = vld [vmem:[%s118 + $0x38] sm:$0xff]
    %v127 = vld [vmem:[%s118 + $0x40] sm:$0xff]
    %v128 = vld [vmem:[%s118 + $0x48] sm:$0xff]
    %v129 = vld [vmem:[%s118 + $0x50] sm:$0xff]
    %v130 = vld [vmem:[%s118 + $0x58] sm:$0xff]
    %v131 = vld [vmem:[%s118 + $0x60] sm:$0xff]
    %v132 = vld [vmem:[%s118 + $0x68] sm:$0xff]
    %v133 = vld [vmem:[%s118 + $0x70] sm:$0xff]
    %v134 = vld [vmem:[%s118 + $0x78] sm:$0xff]
    %v135 = vld [vmem:[#allocation8 + $0x1] sm:$0x1]
    %v136 = vperm.slane %v135, 0
    %137 = vmatpush.msra.mxu0 %v134
    %138 = vmatpush.msra.mxu0 %v133
    %139 = vmatpush.msra.mxu0 %v132
    %140 = vmatpush.msra.mxu0 %v131
    %141 = vmatpush.msra.mxu0 %v130
    %142 = vmatpush.msra.mxu0 %v129
    %143 = vmatpush.msra.mxu0 %v128
    %144 = vmatpush.msra.mxu0 %v127
    %145 = vmatpush.msra.mxu0 %v126
    %146 = vmatpush.msra.mxu0 %v125
    %147 = vmatpush.msra.mxu0 %v124
    %148 = vmatpush.msra.mxu0 %v123
    %149 = vmatpush.msra.mxu0 %v122
    %150 = vmatpush.msra.mxu0 %v121
    %151 = vmatpush.msra.mxu0 %v120
    %152 = vmatpush.msra.mxu0 %v119
    %153 = vmatmul.f32.gmra.mxu0 %v117
    %v154 = vpop.f32.mrf.mxu0
    %v155 = vadd.f32 %v136, %v154
    %156 = vdwg.mxu0
    %v157 = vmax.f32 %v155, 0.0
    %s158 = scalar_lea.vmem [#allocation7], 256
    %v159 = vld [vmem:[%s158] sm:$0xff]
    %v160 = vld [vmem:[%s158 + $0x8] sm:$0xff]
    %v161 = vld [vmem:[%s158 + $0x10] sm:$0xff]
    %v162 = vld [vmem:[%s158 + $0x18] sm:$0xff]
    %v163 = vld [vmem:[%s158 + $0x20] sm:$0xff]
    %v164 = vld [vmem:[%s158 + $0x28] sm:$0xff]
    %v165 = vld [vmem:[%s158 + $0x30] sm:$0xff]
    %v166 = vld [vmem:[%s158 + $0x38] sm:$0xff]
    %v167 = vld [vmem:[%s158 + $0x40] sm:$0xff]
    %v168 = vld [vmem:[%s158 + $0x48] sm:$0xff]
    %v169 = vld [vmem:[%s158 + $0x50] sm:$0xff]
    %v170 = vld [vmem:[%s158 + $0x58] sm:$0xff]
    %v171 = vld [vmem:[%s158 + $0x60] sm:$0xff]
    %v172 = vld [vmem:[%s158 + $0x68] sm:$0xff]
    %v173 = vld [vmem:[%s158 + $0x70] sm:$0xff]
    %v174 = vld [vmem:[%s158 + $0x78] sm:$0xff]
    %v175 = vld [vmem:[#allocation8 + $0x2] sm:$0x1]
    %v176 = vperm.slane %v175, 0
    %177 = vmatpush.msra.mxu0 %v174
    %178 = vmatpush.msra.mxu0 %v173
    %179 = vmatpush.msra.mxu0 %v172
    %180 = vmatpush.msra.mxu0 %v171
    %181 = vmatpush.msra.mxu0 %v170
    %182 = vmatpush.msra.mxu0 %v169
    %183 = vmatpush.msra.mxu0 %v168
    %184 = vmatpush.msra.mxu0 %v167
    %185 = vmatpush.msra.mxu0 %v166
    %186 = vmatpush.msra.mxu0 %v165
    %187 = vmatpush.msra.mxu0 %v164
    %188 = vmatpush.msra.mxu0 %v163
    %189 = vmatpush.msra.mxu0 %v162
    %190 = vmatpush.msra.mxu0 %v161
    %191 = vmatpush.msra.mxu0 %v160
    %192 = vmatpush.msra.mxu0 %v159
    %193 = vmatmul.f32.gmra.mxu0 %v157
    %v194 = vpop.f32.mrf.mxu0
    %v195 = vadd.f32 %v176, %v194
    %196 = vdwg.mxu0
    %v197 = vmax.f32 %v195, 0.0
    %s198 = scalar_lea.vmem [#allocation7], 384
    %v199 = vld [vmem:[%s198] sm:$0xff]
    %v200 = vld [vmem:[%s198 + $0x8] sm:$0xff]
    %v201 = vld [vmem:[%s198 + $0x10] sm:$0xff]
    %v202 = vld [vmem:[%s198 + $0x18] sm:$0xff]
    %v203 = vld [vmem:[%s198 + $0x20] sm:$0xff]
    %v204 = vld [vmem:[%s198 + $0x28] sm:$0xff]
    %v205 = vld [vmem:[%s198 + $0x30] sm:$0xff]
    %v206 = vld [vmem:[%s198 + $0x38] sm:$0xff]
    %v207 = vld [vmem:[%s198 + $0x40] sm:$0xff]
    %v208 = vld [vmem:[%s198 + $0x48] sm:$0xff]
    %v209 = vld [vmem:[%s198 + $0x50] sm:$0xff]
    %v210 = vld [vmem:[%s198 + $0x58] sm:$0xff]
    %v211 = vld [vmem:[%s198 + $0x60] sm:$0xff]
    %v212 = vld [vmem:[%s198 + $0x68] sm:$0xff]
    %v213 = vld [vmem:[%s198 + $0x70] sm:$0xff]
    %v214 = vld [vmem:[%s198 + $0x78] sm:$0xff]
    %v215 = vld [vmem:[#allocation8 + $0x3] sm:$0x1]
    %v216 = vperm.slane %v215, 0
    %217 = vmatpush.msra.mxu0 %v214
    %218 = vmatpush.msra.mxu0 %v213
    %219 = vmatpush.msra.mxu0 %v212
    %220 = vmatpush.msra.mxu0 %v211
    %221 = vmatpush.msra.mxu0 %v210
    %222 = vmatpush.msra.mxu0 %v209
    %223 = vmatpush.msra.mxu0 %v208
    %224 = vmatpush.msra.mxu0 %v207
    %225 = vmatpush.msra.mxu0 %v206
    %226 = vmatpush.msra.mxu0 %v205
    %227 = vmatpush.msra.mxu0 %v204
    %228 = vmatpush.msra.mxu0 %v203
    %229 = vmatpush.msra.mxu0 %v202
    %230 = vmatpush.msra.mxu0 %v201
    %231 = vmatpush.msra.mxu0 %v200
    %232 = vmatpush.msra.mxu0 %v199
    %233 = vmatmul.f32.gmra.mxu0 %v197
    %v234 = vpop.f32.mrf.mxu0
    %v235 = vadd.f32 %v216, %v234
    %236 = vdwg.mxu0
    %v237 = vlaneseq
    %v238 = vand.u32 %v237, 127
    %vm239 = vcmp.lt.s32.totalorder %v238, 64
    %v240 = vsel %vm239, %v235, 0.0
    %v241 = vld [vmem:[#allocation5] sm:$0xff]
    %v242 = vmul.f32 %v235, 0.5
    %v243 = vmul.f32 %v242, 1.442695
    %v244 = vpow.pop %v243
    %v245 = vmul.f32 %v241, %v244
    %v246 = vadd.f32 %v240, %v245
    %s247 = scalar_lea.vmem [#allocation7], 512
    %v248 = vld [vmem:[%s247] sm:$0xff]
    %v249 = vld [vmem:[%s247 + $0x8] sm:$0xff]
    %v250 = vld [vmem:[%s247 + $0x10] sm:$0xff]
    %v251 = vld [vmem:[%s247 + $0x18] sm:$0xff]
    %v252 = vld [vmem:[%s247 + $0x20] sm:$0xff]
    %v253 = vld [vmem:[%s247 + $0x28] sm:$0xff]
    %v254 = vld [vmem:[%s247 + $0x30] sm:$0xff]
    %v255 = vld [vmem:[%s247 + $0x38] sm:$0xff]
    %v256 = vld [vmem:[%s247 + $0x40] sm:$0xff]
    %v257 = vld [vmem:[%s247 + $0x48] sm:$0xff]
    %v258 = vld [vmem:[%s247 + $0x50] sm:$0xff]
    %v259 = vld [vmem:[%s247 + $0x58] sm:$0xff]
    %v260 = vld [vmem:[%s247 + $0x60] sm:$0xff]
    %v261 = vld [vmem:[%s247 + $0x68] sm:$0xff]
    %v262 = vld [vmem:[%s247 + $0x70] sm:$0xff]
    %v263 = vld [vmem:[%s247 + $0x78] sm:$0xff]
    %v264 = vld [vmem:[#allocation8 + $0x4] sm:$0x1]
    %v265 = vperm.slane %v264, 0
    %266 = vmatpush.msra.mxu0 %v263
    %267 = vmatpush.msra.mxu0 %v262
    %268 = vmatpush.msra.mxu0 %v261
    %269 = vmatpush.msra.mxu0 %v260
    %270 = vmatpush.msra.mxu0 %v259
    %271 = vmatpush.msra.mxu0 %v258
    %272 = vmatpush.msra.mxu0 %v257
    %273 = vmatpush.msra.mxu0 %v256
    %274 = vmatpush.msra.mxu0 %v255
    %275 = vmatpush.msra.mxu0 %v254
    %276 = vmatpush.msra.mxu0 %v253
    %277 = vmatpush.msra.mxu0 %v252
    %278 = vmatpush.msra.mxu0 %v251
    %279 = vmatpush.msra.mxu0 %v250
    %280 = vmatpush.msra.mxu0 %v249
    %281 = vmatpush.msra.mxu0 %v248
    %282 = vmatmul.f32.gmra.mxu0 %v246
    %v283 = vpop.f32.mrf.mxu0
    %v284 = vadd.f32 %v265, %v283
    %285 = vdwg.mxu0
    %v286 = vmax.f32 %v284, 0.0
    %s287 = scalar_lea.vmem [#allocation7], 640
    %v288 = vld [vmem:[%s287] sm:$0xff]
    %v289 = vld [vmem:[%s287 + $0x8] sm:$0xff]
    %v290 = vld [vmem:[%s287 + $0x10] sm:$0xff]
    %v291 = vld [vmem:[%s287 + $0x18] sm:$0xff]
    %v292 = vld [vmem:[%s287 + $0x20] sm:$0xff]
    %v293 = vld [vmem:[%s287 + $0x28] sm:$0xff]
    %v294 = vld [vmem:[%s287 + $0x30] sm:$0xff]
    %v295 = vld [vmem:[%s287 + $0x38] sm:$0xff]
    %v296 = vld [vmem:[%s287 + $0x40] sm:$0xff]
    %v297 = vld [vmem:[%s287 + $0x48] sm:$0xff]
    %v298 = vld [vmem:[%s287 + $0x50] sm:$0xff]
    %v299 = vld [vmem:[%s287 + $0x58] sm:$0xff]
    %v300 = vld [vmem:[%s287 + $0x60] sm:$0xff]
    %v301 = vld [vmem:[%s287 + $0x68] sm:$0xff]
    %v302 = vld [vmem:[%s287 + $0x70] sm:$0xff]
    %v303 = vld [vmem:[%s287 + $0x78] sm:$0xff]
    %v304 = vld [vmem:[#allocation8 + $0x5] sm:$0x1]
    %v305 = vperm.slane %v304, 0
    %306 = vmatpush.msra.mxu0 %v303
    %307 = vmatpush.msra.mxu0 %v302
    %308 = vmatpush.msra.mxu0 %v301
    %309 = vmatpush.msra.mxu0 %v300
    %310 = vmatpush.msra.mxu0 %v299
    %311 = vmatpush.msra.mxu0 %v298
    %312 = vmatpush.msra.mxu0 %v297
    %313 = vmatpush.msra.mxu0 %v296
    %314 = vmatpush.msra.mxu0 %v295
    %315 = vmatpush.msra.mxu0 %v294
    %316 = vmatpush.msra.mxu0 %v293
    %317 = vmatpush.msra.mxu0 %v292
    %318 = vmatpush.msra.mxu0 %v291
    %319 = vmatpush.msra.mxu0 %v290
    %320 = vmatpush.msra.mxu0 %v289
    %321 = vmatpush.msra.mxu0 %v288
    %322 = vmatmul.f32.gmra.mxu0 %v286
    %v323 = vpop.f32.mrf.mxu0
    %v324 = vadd.f32 %v305, %v323
    %325 = vdwg.mxu0
    %v326 = vmax.f32 %v324, 0.0
    %s327 = scalar_lea.vmem [#allocation7], 768
    %v328 = vld [vmem:[%s327] sm:$0xff]
    %v329 = vld [vmem:[%s327 + $0x8] sm:$0xff]
    %v330 = vld [vmem:[%s327 + $0x10] sm:$0xff]
    %v331 = vld [vmem:[%s327 + $0x18] sm:$0xff]
    %v332 = vld [vmem:[%s327 + $0x20] sm:$0xff]
    %v333 = vld [vmem:[%s327 + $0x28] sm:$0xff]
    %v334 = vld [vmem:[%s327 + $0x30] sm:$0xff]
    %v335 = vld [vmem:[%s327 + $0x38] sm:$0xff]
    %v336 = vld [vmem:[%s327 + $0x40] sm:$0xff]
    %v337 = vld [vmem:[%s327 + $0x48] sm:$0xff]
    %v338 = vld [vmem:[%s327 + $0x50] sm:$0xff]
    %v339 = vld [vmem:[%s327 + $0x58] sm:$0xff]
    %v340 = vld [vmem:[%s327 + $0x60] sm:$0xff]
    %v341 = vld [vmem:[%s327 + $0x68] sm:$0xff]
    %v342 = vld [vmem:[%s327 + $0x70] sm:$0xff]
    %v343 = vld [vmem:[%s327 + $0x78] sm:$0xff]
    %v344 = vld [vmem:[#allocation8 + $0x6] sm:$0x1]
    %v345 = vperm.slane %v344, 0
    %346 = vmatpush.msra.mxu0 %v343
    %347 = vmatpush.msra.mxu0 %v342
    %348 = vmatpush.msra.mxu0 %v341
    %349 = vmatpush.msra.mxu0 %v340
    %350 = vmatpush.msra.mxu0 %v339
    %351 = vmatpush.msra.mxu0 %v338
    %352 = vmatpush.msra.mxu0 %v337
    %353 = vmatpush.msra.mxu0 %v336
    %354 = vmatpush.msra.mxu0 %v335
    %355 = vmatpush.msra.mxu0 %v334
    %356 = vmatpush.msra.mxu0 %v333
    %357 = vmatpush.msra.mxu0 %v332
    %358 = vmatpush.msra.mxu0 %v331
    %359 = vmatpush.msra.mxu0 %v330
    %360 = vmatpush.msra.mxu0 %v329
    %361 = vmatpush.msra.mxu0 %v328
    %362 = vmatmul.f32.gmra.mxu0 %v326
    %v363 = vpop.f32.mrf.mxu0
    %v364 = vadd.f32 %v345, %v363
    %365 = vdwg.mxu0
    %v366 = vmax.f32 %v364, 0.0
    %s367 = scalar_lea.vmem [#allocation7], 896
    %v368 = vld [vmem:[%s367] sm:$0xff]
    %v369 = vld [vmem:[%s367 + $0x8] sm:$0xff]
    %v370 = vld [vmem:[%s367 + $0x10] sm:$0xff]
    %v371 = vld [vmem:[%s367 + $0x18] sm:$0xff]
    %v372 = vld [vmem:[%s367 + $0x20] sm:$0xff]
    %v373 = vld [vmem:[%s367 + $0x28] sm:$0xff]
    %v374 = vld [vmem:[%s367 + $0x30] sm:$0xff]
    %v375 = vld [vmem:[%s367 + $0x38] sm:$0xff]
    %v376 = vld [vmem:[%s367 + $0x40] sm:$0xff]
    %v377 = vld [vmem:[%s367 + $0x48] sm:$0xff]
    %v378 = vld [vmem:[%s367 + $0x50] sm:$0xff]
    %v379 = vld [vmem:[%s367 + $0x58] sm:$0xff]
    %v380 = vld [vmem:[%s367 + $0x60] sm:$0xff]
    %v381 = vld [vmem:[%s367 + $0x68] sm:$0xff]
    %v382 = vld [vmem:[%s367 + $0x70] sm:$0xff]
    %v383 = vld [vmem:[%s367 + $0x78] sm:$0xff]
    %v384 = vld [vmem:[#allocation8 + $0x7] sm:$0x1]
    %v385 = vperm.slane %v384, 0
    %386 = vmatpush.msra.mxu0 %v383
    %387 = vmatpush.msra.mxu0 %v382
    %388 = vmatpush.msra.mxu0 %v381
    %389 = vmatpush.msra.mxu0 %v380
    %390 = vmatpush.msra.mxu0 %v379
    %391 = vmatpush.msra.mxu0 %v378
    %392 = vmatpush.msra.mxu0 %v377
    %393 = vmatpush.msra.mxu0 %v376
    %394 = vmatpush.msra.mxu0 %v375
    %395 = vmatpush.msra.mxu0 %v374
    %396 = vmatpush.msra.mxu0 %v373
    %397 = vmatpush.msra.mxu0 %v372
    %398 = vmatpush.msra.mxu0 %v371
    %399 = vmatpush.msra.mxu0 %v370
    %400 = vmatpush.msra.mxu0 %v369
    %401 = vmatpush.msra.mxu0 %v368
    %402 = vmatmul.f32.gmra.mxu0 %v366
    %v403 = vpop.f32.mrf.mxu0
    %v404 = vadd.f32 %v385, %v403
    %405 = vdwg.mxu0
    %406 = vst [vmem:[#allocation10] sm:$0xff] %v404
    %407 = vst [vmem:[#allocation11] sm:$0xff] %v235
    // Predicated region
    $region34: #{tpu_custom_call.1} parent=1 // pred_check
      _
    $region35: #{tpu_custom_call.1} parent=1 // pred_check_branch
      %409 = sbr.rel (0) target = $region37
    $region36: #{tpu_custom_call.1} parent=1 // pred_region
      %411 = vsyncadd [#allocation4], 0
      %s413 = sshll.u32 [#allocation10], 4
      %s414 = int_to_ptr.vmem [resolvable:$true] %s413
      %s415 = sshll.u32 %s4, 4
      %s416 = int_to_ptr.hbm [resolvable:$true] %s415
      %418 = dma.vmem_to_hbm [thread:$0]  %s414, 128, %s416, [#allocation4]
    $region37: #{tpu_custom_call.1} parent=1 // pred_fallthru
      _
    // Predicated region
    $region38: #{tpu_custom_call.1} parent=1 // pred_check
      _
    $region39: #{tpu_custom_call.1} parent=1 // pred_check_branch
      %420 = sbr.rel (0) target = $region41
    $region40: #{tpu_custom_call.1} parent=1 // pred_region
      %422 = vsyncadd [#allocation12], 0
      %s424 = sshll.u32 [#allocation11], 4
      %s425 = int_to_ptr.vmem [resolvable:$true] %s424
      %s426 = sshll.u32 %s5, 4
      %s427 = int_to_ptr.hbm [resolvable:$true] %s426
      %429 = dma.vmem_to_hbm [thread:$0]  %s425, 128, %s427, [#allocation12]
    $region41: #{tpu_custom_call.1} parent=1 // pred_fallthru
      _
    // Predicated region
    $region42: #{tpu_custom_call.1} parent=1 // pred_check
      _
    $region43: #{tpu_custom_call.1} parent=1 // pred_check_branch
      %431 = sbr.rel (0) target = $region45
    $region44: #{tpu_custom_call.1} parent=1 // pred_region
      %433 = dma.done [#allocation4], 128
    $region45: #{tpu_custom_call.1} parent=1 // pred_fallthru
      _
    // Predicated region
    $region46: #{tpu_custom_call.1} parent=1 // pred_check
      _
    $region47: #{tpu_custom_call.1} parent=1 // pred_check_branch
      %435 = sbr.rel (0) target = $region49
    $region48: #{tpu_custom_call.1} parent=1 // pred_region
      %437 = dma.done [#allocation12], 128
    $region49: #{tpu_custom_call.1} parent=1 // pred_fallthru
      _
    %438 = vsyncpa [#allocation3], 1
    %439 = vsyncpa [#allocation6], 1
    %440 = vsyncpa [#allocation9], 1
    %441 = vsyncpa [#allocation4], 1
    %442 = vsyncpa [#allocation12], 1

</llo_original>
